<compile_context>
chip_gen: v5e
topology: v5e:2x2
jax: 0.10.0
libtpu: 0.0.40
codegen_flags: <defaults>
</compile_context>

<pallas_src>
import jax
import jax.numpy as jnp
import numpy as np
from jax.experimental import pallas as pl
from jax.experimental.pallas import tpu as pltpu

_SMALL_C_MAX = 8                 # C <= 8 -> VPU path with SMEM scalar weights
_LANE = 128
_TARGET_TILE_BYTES = 1 << 20     # ~1 MiB x-tile: DMA time >> 0.35us step overhead
_VMEM_BUDGET = 40 << 20          # headroom inside v7x's 64 MiB physical VMEM
_VPU_MAX_LANES = 2048            # bound live vregs in the unrolled VPU path


def _cg_kernel_vpu(x_ref, w_ref, b_ref, o_ref):
    # x_ref: VMEM (C, T); w_ref: SMEM (C, C) f32; b_ref: SMEM (C,) f32; o_ref: VMEM (C, T)
    x = x_ref[...]
    xf = x.astype(jnp.float32)
    C = xf.shape[0]
    rows = []
    for o in range(C):
        acc = xf[0:1, :] * w_ref[o, 0] + b_ref[o]
        for c in range(1, C):
            acc = acc + xf[c:c + 1, :] * w_ref[o, c]
        rows.append(acc)
    lin = jnp.concatenate(rows, axis=0)           # (C, T) f32
    gate = jax.nn.sigmoid(lin)                    # EUP, f32
    o_ref[...] = (xf * gate).astype(o_ref.dtype)  # single lane-dense store


def _cg_kernel_mxu(x_ref, w_ref, b_ref, o_ref):
    # x_ref: VMEM (C, T); w_ref: VMEM (C, C); b_ref: VMEM (C, 1); o_ref: VMEM (C, T)
    x = x_ref[...]
    lin = jnp.dot(w_ref[...], x, preferred_element_type=jnp.float32)
    lin = lin + b_ref[...].astype(jnp.float32)    # (C,1) broadcast over lanes
    gate = jax.nn.sigmoid(lin)
    o_ref[...] = (x.astype(jnp.float32) * gate).astype(o_ref.dtype)


def _pick_tile_hw(C, HW, itemsize, w_bytes, small_c):
    """Lane-tile (multiple of 128, or the full spatial dim) sized for ~1 MiB slabs."""
    target = max(_LANE, _TARGET_TILE_BYTES // max(1, C * itemsize))
    if small_c:
        target = min(target, _VPU_MAX_LANES)
    # VMEM: double-buffered in + out tiles plus double-buffered weight.
    cap = (_VMEM_BUDGET - 2 * w_bytes) // max(1, 4 * C * itemsize)
    limit = min(target, max(cap, _LANE))
    if HW <= limit:
        return HW                                  # full dim is always a legal block
    return max(_LANE, (limit // _LANE) * _LANE)


def context_gating(x_nchw, weight, bias, *, tile_hw=None):
    """x_nchw: (N, C, H, W); weight: (C, C) PyTorch Linear weight (out, in); bias: (C,)."""
    N, C, H, W = x_nchw.shape
    HW = H * W
    x3 = x_nchw.reshape(N, C, HW)                 # free reshape (row-major), no HBM transpose

    itemsize = jnp.dtype(x_nchw.dtype).itemsize
    w_itemsize = jnp.dtype(weight.dtype).itemsize
    small_c = C <= _SMALL_C_MAX
    w_bytes = C * C * w_itemsize

    if tile_hw is None:
        tile_hw = _pick_tile_hw(C, HW, itemsize, w_bytes, small_c)

    n_hw = pl.cdiv(HW, tile_hw)
    grid = (N, n_hw)                              # both parallel (v7x: shards across 2 TCs)

    x_spec = pl.BlockSpec((None, C, tile_hw), lambda n, s: (n, 0, s))
    o_spec = pl.BlockSpec((None, C, tile_hw), lambda n, s: (n, 0, s))

    if small_c:
        kernel = _cg_kernel_vpu
        w_arg = weight.astype(jnp.float32)        # SMEM holds 32-bit scalars
        b_arg = bias.astype(jnp.float32)
        w_spec = pl.BlockSpec(memory_space=pltpu.MemorySpace.SMEM)
        b_spec = pl.BlockSpec(memory_space=pltpu.MemorySpace.SMEM)
    else:
        kernel = _cg_kernel_mxu
        w_arg = weight                            # lin = W @ X, no transpose copy
        b_arg = bias.reshape(C, 1)
        w_spec = pl.BlockSpec((C, C), lambda n, s: (0, 0))
        b_spec = pl.BlockSpec((C, 1), lambda n, s: (0, 0))

    est_vmem = (4 * tile_hw * C * itemsize        # double-buffered in + out tiles
                + 2 * w_bytes                     # double-buffered weight
                + (2 << 20))                      # slack for compiler scratch
    vmem_limit = int(max(32 * 1024 * 1024, est_vmem))

    out3 = pl.pallas_call(
        kernel,
        out_shape=jax.ShapeDtypeStruct((N, C, HW), x_nchw.dtype),
        grid_spec=pltpu.PrefetchScalarGridSpec(
            num_scalar_prefetch=0,
            grid=grid,
            in_specs=[x_spec, w_spec, b_spec],
            out_specs=o_spec,
        ),
        compiler_params=pltpu.CompilerParams(
            dimension_semantics=("parallel", "parallel"),
            vmem_limit_bytes=vmem_limit,
        ),
    )(x3, w_arg, b_arg)

    return out3.reshape(N, C, H, W)


def context_gating_ref(x_nchw, weight, bias):
    x_nhwc = jnp.transpose(x_nchw, (0, 2, 3, 1))
    lin = jnp.einsum("nhwc,oc->nhwo", x_nhwc, weight) + bias
    lin = jnp.transpose(lin, (0, 3, 1, 2))
    return x_nchw * jax.nn.sigmoid(lin)


if __name__ == "__main__":
    key = jax.random.PRNGKey(0)
    k_x, k_w, k_b, k_x2, k_w2, k_b2 = jax.random.split(key, 6)

    # Small-C case (VPU path) — matches the module's test shape.
    N, C, H, W = 2, 4, 16, 16
    x = jax.random.normal(k_x, (N, C, H, W), dtype=jnp.float32)
    bound = 1.0 / float(np.sqrt(C))
    weight = jax.random.uniform(k_w, (C, C), minval=-bound, maxval=bound, dtype=jnp.float32)
    bias = jax.random.uniform(k_b, (C,), minval=-bound, maxval=bound, dtype=jnp.float32)

    out = jax.block_until_ready(context_gating(x, weight, bias))
    ref = context_gating_ref(x, weight, bias)
    np.testing.assert_allclose(np.asarray(out), np.asarray(ref), rtol=1e-5, atol=1e-5)

    # Larger-C smoke test (MXU path).
    N2, C2, H2, W2 = 2, 128, 16, 16
    x2 = jax.random.normal(k_x2, (N2, C2, H2, W2), dtype=jnp.float32)
    bound2 = 1.0 / float(np.sqrt(C2))
    weight2 = jax.random.uniform(k_w2, (C2, C2), minval=-bound2, maxval=bound2, dtype=jnp.float32)
    bias2 = jax.random.uniform(k_b2, (C2,), minval=-bound2, maxval=bound2, dtype=jnp.float32)

    out2 = jax.block_until_ready(context_gating(x2, weight2, bias2))
    ref2 = context_gating_ref(x2, weight2, bias2)
    np.testing.assert_allclose(np.asarray(out2), np.asarray(ref2), rtol=1e-4, atol=1e-4)

    print("KERNEL_OK")
</pallas_src>

<mosaic_0001>
module attributes {stable_mosaic.version = 11 : i64} {
  func.func @_cg_kernel_vpu(%arg0: i32, %arg1: i32, %arg2: memref<1x4x256xf32, #tpu.memory_space<vmem>>, %arg3: memref<4x4xf32, #tpu.memory_space<smem>>, %arg4: memref<4xf32, #tpu.memory_space<smem>>, %arg5: memref<1x4x256xf32, #tpu.memory_space<vmem>>) attributes {dimension_semantics = [#tpu.dimension_semantics<parallel>, #tpu.dimension_semantics<parallel>], iteration_bounds = array<i64: 2, 1>, scalar_prefetch = 0 : i64, scratch_operands = 0 : i64, tpu.core_type = #tpu.core_type<tc>, window_params = [{transform_indices = @transform_0, window_bounds = array<i64: 1, 4, 256>}, {transform_indices = @transform_1, window_bounds = array<i64: 4, 4>}, {transform_indices = @transform_2, window_bounds = array<i64: 4>}, {transform_indices = @transform_3, window_bounds = array<i64: 1, 4, 256>}]} {
    %c0 = arith.constant 0 : index
    %c0_0 = arith.constant 0 : index
    %c0_1 = arith.constant 0 : index
    %0 = vector.load %arg2[%c0, %c0_0, %c0_1] : memref<1x4x256xf32, #tpu.memory_space<vmem>>, vector<1x4x256xf32>
    %1 = vector.shape_cast %0 : vector<1x4x256xf32> to vector<4x256xf32>
    %2 = vector.extract_strided_slice %1 {offsets = [0, 0], sizes = [1, 256], strides = [1, 1]} : vector<4x256xf32> to vector<1x256xf32>
    %c0_2 = arith.constant 0 : index
    %c0_3 = arith.constant 0 : index
    %3 = memref.load %arg3[%c0_2, %c0_3] : memref<4x4xf32, #tpu.memory_space<smem>>
    %4 = vector.broadcast %3 : f32 to vector<1x256xf32>
    %5 = arith.mulf %2, %4 : vector<1x256xf32>
    %c0_4 = arith.constant 0 : index
    %6 = memref.load %arg4[%c0_4] : memref<4xf32, #tpu.memory_space<smem>>
    %7 = vector.broadcast %6 : f32 to vector<1x256xf32>
    %8 = arith.addf %5, %7 : vector<1x256xf32>
    %9 = vector.extract_strided_slice %1 {offsets = [1, 0], sizes = [1, 256], strides = [1, 1]} : vector<4x256xf32> to vector<1x256xf32>
    %c0_5 = arith.constant 0 : index
    %c1 = arith.constant 1 : index
    %10 = memref.load %arg3[%c0_5, %c1] : memref<4x4xf32, #tpu.memory_space<smem>>
    %11 = vector.broadcast %10 : f32 to vector<1x256xf32>
    %12 = arith.mulf %9, %11 : vector<1x256xf32>
    %13 = arith.addf %8, %12 : vector<1x256xf32>
    %14 = vector.extract_strided_slice %1 {offsets = [2, 0], sizes = [1, 256], strides = [1, 1]} : vector<4x256xf32> to vector<1x256xf32>
    %c0_6 = arith.constant 0 : index
    %c2 = arith.constant 2 : index
    %15 = memref.load %arg3[%c0_6, %c2] : memref<4x4xf32, #tpu.memory_space<smem>>
    %16 = vector.broadcast %15 : f32 to vector<1x256xf32>
    %17 = arith.mulf %14, %16 : vector<1x256xf32>
    %18 = arith.addf %13, %17 : vector<1x256xf32>
    %19 = vector.extract_strided_slice %1 {offsets = [3, 0], sizes = [1, 256], strides = [1, 1]} : vector<4x256xf32> to vector<1x256xf32>
    %c0_7 = arith.constant 0 : index
    %c3 = arith.constant 3 : index
    %20 = memref.load %arg3[%c0_7, %c3] : memref<4x4xf32, #tpu.memory_space<smem>>
    %21 = vector.broadcast %20 : f32 to vector<1x256xf32>
    %22 = arith.mulf %19, %21 : vector<1x256xf32>
    %23 = arith.addf %18, %22 : vector<1x256xf32>
    %24 = vector.extract_strided_slice %1 {offsets = [0, 0], sizes = [1, 256], strides = [1, 1]} : vector<4x256xf32> to vector<1x256xf32>
    %c1_8 = arith.constant 1 : index
    %c0_9 = arith.constant 0 : index
    %25 = memref.load %arg3[%c1_8, %c0_9] : memref<4x4xf32, #tpu.memory_space<smem>>
    %26 = vector.broadcast %25 : f32 to vector<1x256xf32>
    %27 = arith.mulf %24, %26 : vector<1x256xf32>
    %c1_10 = arith.constant 1 : index
    %28 = memref.load %arg4[%c1_10] : memref<4xf32, #tpu.memory_space<smem>>
    %29 = vector.broadcast %28 : f32 to vector<1x256xf32>
    %30 = arith.addf %27, %29 : vector<1x256xf32>
    %31 = vector.extract_strided_slice %1 {offsets = [1, 0], sizes = [1, 256], strides = [1, 1]} : vector<4x256xf32> to vector<1x256xf32>
    %c1_11 = arith.constant 1 : index
    %c1_12 = arith.constant 1 : index
    %32 = memref.load %arg3[%c1_11, %c1_12] : memref<4x4xf32, #tpu.memory_space<smem>>
    %33 = vector.broadcast %32 : f32 to vector<1x256xf32>
    %34 = arith.mulf %31, %33 : vector<1x256xf32>
    %35 = arith.addf %30, %34 : vector<1x256xf32>
    %36 = vector.extract_strided_slice %1 {offsets = [2, 0], sizes = [1, 256], strides = [1, 1]} : vector<4x256xf32> to vector<1x256xf32>
    %c1_13 = arith.constant 1 : index
    %c2_14 = arith.constant 2 : index
    %37 = memref.load %arg3[%c1_13, %c2_14] : memref<4x4xf32, #tpu.memory_space<smem>>
    %38 = vector.broadcast %37 : f32 to vector<1x256xf32>
    %39 = arith.mulf %36, %38 : vector<1x256xf32>
    %40 = arith.addf %35, %39 : vector<1x256xf32>
    %41 = vector.extract_strided_slice %1 {offsets = [3, 0], sizes = [1, 256], strides = [1, 1]} : vector<4x256xf32> to vector<1x256xf32>
    %c1_15 = arith.constant 1 : index
    %c3_16 = arith.constant 3 : index
    %42 = memref.load %arg3[%c1_15, %c3_16] : memref<4x4xf32, #tpu.memory_space<smem>>
    %43 = vector.broadcast %42 : f32 to vector<1x256xf32>
    %44 = arith.mulf %41, %43 : vector<1x256xf32>
    %45 = arith.addf %40, %44 : vector<1x256xf32>
    %46 = vector.extract_strided_slice %1 {offsets = [0, 0], sizes = [1, 256], strides = [1, 1]} : vector<4x256xf32> to vector<1x256xf32>
    %c2_17 = arith.constant 2 : index
    %c0_18 = arith.constant 0 : index
    %47 = memref.load %arg3[%c2_17, %c0_18] : memref<4x4xf32, #tpu.memory_space<smem>>
    %48 = vector.broadcast %47 : f32 to vector<1x256xf32>
    %49 = arith.mulf %46, %48 : vector<1x256xf32>
    %c2_19 = arith.constant 2 : index
    %50 = memref.load %arg4[%c2_19] : memref<4xf32, #tpu.memory_space<smem>>
    %51 = vector.broadcast %50 : f32 to vector<1x256xf32>
    %52 = arith.addf %49, %51 : vector<1x256xf32>
    %53 = vector.extract_strided_slice %1 {offsets = [1, 0], sizes = [1, 256], strides = [1, 1]} : vector<4x256xf32> to vector<1x256xf32>
    %c2_20 = arith.constant 2 : index
    %c1_21 = arith.constant 1 : index
    %54 = memref.load %arg3[%c2_20, %c1_21] : memref<4x4xf32, #tpu.memory_space<smem>>
    %55 = vector.broadcast %54 : f32 to vector<1x256xf32>
    %56 = arith.mulf %53, %55 : vector<1x256xf32>
    %57 = arith.addf %52, %56 : vector<1x256xf32>
    %58 = vector.extract_strided_slice %1 {offsets = [2, 0], sizes = [1, 256], strides = [1, 1]} : vector<4x256xf32> to vector<1x256xf32>
    %c2_22 = arith.constant 2 : index
    %c2_23 = arith.constant 2 : index
    %59 = memref.load %arg3[%c2_22, %c2_23] : memref<4x4xf32, #tpu.memory_space<smem>>
    %60 = vector.broadcast %59 : f32 to vector<1x256xf32>
    %61 = arith.mulf %58, %60 : vector<1x256xf32>
    %62 = arith.addf %57, %61 : vector<1x256xf32>
    %63 = vector.extract_strided_slice %1 {offsets = [3, 0], sizes = [1, 256], strides = [1, 1]} : vector<4x256xf32> to vector<1x256xf32>
    %c2_24 = arith.constant 2 : index
    %c3_25 = arith.constant 3 : index
    %64 = memref.load %arg3[%c2_24, %c3_25] : memref<4x4xf32, #tpu.memory_space<smem>>
    %65 = vector.broadcast %64 : f32 to vector<1x256xf32>
    %66 = arith.mulf %63, %65 : vector<1x256xf32>
    %67 = arith.addf %62, %66 : vector<1x256xf32>
    %68 = vector.extract_strided_slice %1 {offsets = [0, 0], sizes = [1, 256], strides = [1, 1]} : vector<4x256xf32> to vector<1x256xf32>
    %c3_26 = arith.constant 3 : index
    %c0_27 = arith.constant 0 : index
    %69 = memref.load %arg3[%c3_26, %c0_27] : memref<4x4xf32, #tpu.memory_space<smem>>
    %70 = vector.broadcast %69 : f32 to vector<1x256xf32>
    %71 = arith.mulf %68, %70 : vector<1x256xf32>
    %c3_28 = arith.constant 3 : index
    %72 = memref.load %arg4[%c3_28] : memref<4xf32, #tpu.memory_space<smem>>
    %73 = vector.broadcast %72 : f32 to vector<1x256xf32>
    %74 = arith.addf %71, %73 : vector<1x256xf32>
    %75 = vector.extract_strided_slice %1 {offsets = [1, 0], sizes = [1, 256], strides = [1, 1]} : vector<4x256xf32> to vector<1x256xf32>
    %c3_29 = arith.constant 3 : index
    %c1_30 = arith.constant 1 : index
    %76 = memref.load %arg3[%c3_29, %c1_30] : memref<4x4xf32, #tpu.memory_space<smem>>
    %77 = vector.broadcast %76 : f32 to vector<1x256xf32>
    %78 = arith.mulf %75, %77 : vector<1x256xf32>
    %79 = arith.addf %74, %78 : vector<1x256xf32>
    %80 = vector.extract_strided_slice %1 {offsets = [2, 0], sizes = [1, 256], strides = [1, 1]} : vector<4x256xf32> to vector<1x256xf32>
    %c3_31 = arith.constant 3 : index
    %c2_32 = arith.constant 2 : index
    %81 = memref.load %arg3[%c3_31, %c2_32] : memref<4x4xf32, #tpu.memory_space<smem>>
    %82 = vector.broadcast %81 : f32 to vector<1x256xf32>
    %83 = arith.mulf %80, %82 : vector<1x256xf32>
    %84 = arith.addf %79, %83 : vector<1x256xf32>
    %85 = vector.extract_strided_slice %1 {offsets = [3, 0], sizes = [1, 256], strides = [1, 1]} : vector<4x256xf32> to vector<1x256xf32>
    %c3_33 = arith.constant 3 : index
    %c3_34 = arith.constant 3 : index
    %86 = memref.load %arg3[%c3_33, %c3_34] : memref<4x4xf32, #tpu.memory_space<smem>>
    %87 = vector.broadcast %86 : f32 to vector<1x256xf32>
    %88 = arith.mulf %85, %87 : vector<1x256xf32>
    %89 = arith.addf %84, %88 : vector<1x256xf32>
    %90 = tpu.concatenate %23, %45, %67, %89 in 0 : vector<1x256xf32>, vector<1x256xf32>, vector<1x256xf32>, vector<1x256xf32> -> vector<4x256xf32>
    %91 = arith.negf %90 : vector<4x256xf32>
    %92 = math.exp %91 : vector<4x256xf32>
    %cst = arith.constant 1.000000e+00 : f32
    %93 = vector.broadcast %cst : f32 to vector<4x256xf32>
    %94 = arith.addf %93, %92 : vector<4x256xf32>
    %95 = arith.divf %93, %94 : vector<4x256xf32>
    %96 = arith.mulf %1, %95 : vector<4x256xf32>
    %c0_35 = arith.constant 0 : index
    %c0_36 = arith.constant 0 : index
    %c0_37 = arith.constant 0 : index
    %97 = vector.load %arg5[%c0_35, %c0_36, %c0_37] : memref<1x4x256xf32, #tpu.memory_space<vmem>>, vector<1x4x256xf32>
    %98 = vector.shape_cast %97 : vector<1x4x256xf32> to vector<4x256xf32>
    %99 = vector.shape_cast %96 : vector<4x256xf32> to vector<1x4x256xf32>
    tpu.vector_store %arg5[%c0_35, %c0_36, %c0_37], %99 {strides = array<i32>} : memref<1x4x256xf32, #tpu.memory_space<vmem>>, vector<1x4x256xf32>,
    return
  }
  func.func @transform_0(%arg0: i32, %arg1: i32) -> (i32, i32, i32) {
    %c0_i32 = arith.constant 0 : i32
    %c0_i32_0 = arith.constant 0 : i32
    return %arg0, %c0_i32, %arg1 : i32, i32, i32
  }
  func.func @transform_1(%arg0: i32, %arg1: i32) -> (i32, i32) {
    %c0_i32 = arith.constant 0 : i32
    %c0_i32_0 = arith.constant 0 : i32
    %c0_i32_1 = arith.constant 0 : i32
    return %c0_i32, %c0_i32_0 : i32, i32
  }
  func.func @transform_2(%arg0: i32, %arg1: i32) -> i32 {
    %c0_i32 = arith.constant 0 : i32
    %c0_i32_0 = arith.constant 0 : i32
    return %c0_i32 : i32
  }
  func.func @transform_3(%arg0: i32, %arg1: i32) -> (i32, i32, i32) {
    %c0_i32 = arith.constant 0 : i32
    %c0_i32_0 = arith.constant 0 : i32
    return %arg0, %c0_i32, %arg1 : i32, i32, i32
  }
}

</mosaic_0001>

<llo_original>
// kernel: tpu_custom_call.1
$region0: #{tpu_custom_call.1}
  #allocation0 [shape = 'u32[]', space=smem, size = 0x4, offset = 0x4, fixed_abs, tag = 'smem constant byte address 0x4 - core index']
  #allocation1 [shape = 'u32[72,128]{1,0:T(1,128)}', space=vmem, size = 0x9000, scoped, tag = 'internal scratch']
  %s0 = inlined_call_operand.hbm [shape: f32[2,4,256], index: 0, kind: input, shape index: {}]
  %s1 = inlined_call_operand.hbm [shape: f32[4,4], index: 1, kind: input, shape index: {}]
  %s2 = inlined_call_operand.vmem [shape: f32[4], index: 2, kind: input, shape index: {}]
  %s3 = inlined_call_operand.hbm [shape: f32[2,4,256], index: 3, kind: output, shape index: {}]
  %s4 = sld [smem:[#allocation0]]
  $region57: #{tpu_custom_call.1} parent=0
    _
  %s6 = ssub.s32 1, %s4
  %s7 = scalar_select 0, %s6, %s4
  $region1: #{tpu_custom_call.1} parent=0
    #allocation2 [shape = 'u8[8192]{0}', space=vmem, size = 0x2000, scoped, tag = 'input window, operand 0']
    #allocation3 [shape = 's32[2]{0}', space=sflag, size = 0x8, scoped, tag = 'scoped memory for tpu_custom_call.1']
    #allocation4 [shape = 's32[2]{0}', space=sflag, size = 0x8, scoped, tag = 'scoped memory for tpu_custom_call.1']
    #allocation5 [shape = 's32[2]{0}', space=sflag, size = 0x8, scoped, tag = 'scoped memory for tpu_custom_call.1']
    #allocation6 [shape = 's32[2]{0}', space=sflag, size = 0x8, scoped, tag = 'scoped memory for tpu_custom_call.1']
    #allocation7 [shape = 'u8[2048]{0}', space=smem, size = 0x800, scoped, tag = 'input window, operand 1, single buffered']
    #allocation8 [shape = 'u8[512]{0}', space=smem, size = 0x200, scoped, tag = 'input window, operand 2, single buffered']
    #allocation9 [shape = 'u8[8192]{0}', space=vmem, size = 0x2000, scoped, tag = 'output window, operand 0']
    %8 = vsyncpa [#allocation3], 0
    %s9 = scalar_lea.sflag [#allocation3], 1
    %10 = vsyncpa %s9, 0
    %11 = vsyncpa [#allocation5], 0
    %12 = vsyncpa [#allocation6], 0
    %13 = vsyncpa [#allocation4], 0
    %s14 = scalar_lea.sflag [#allocation4], 1
    %15 = vsyncpa %s14, 0
    loop: start=0, step=1, limit=4
    $region2: #{tpu_custom_call.1} parent=1 // loop_pre_header
      _
    $region3: #{tpu_custom_call.1} parent=1 // loop_header
      %s17 = sphi 0, %s21
      %p18 = scmp.ge.s32.totalorder %s17, 4
      %s24 = sphi 0, %s36
      %s25 = sphi 0, %s32
      %s26 = sphi 0, %s24
      %s27 = sphi 0, %s25
      %s28 = sphi 0, %s26
      %s29 = sphi 0, %s27
      %s41 = sphi 0, %s43
      %s44 = sphi 0, %s41
      %s45 = sphi 0, %s44
      %s61 = sphi 0, %s45
      %s65 = sphi 0, %s65
      %s67 = sphi 0, %s65
      %s68 = sphi 0, %s67
      %s82 = sphi 0, %s68
      %s86 = sphi 0, %s86
      %s88 = sphi 0, %s86
      %s89 = sphi 0, %s88
      %s103 = sphi 0, %s89
      %s111 = sphi 0, %s113
      %s114 = sphi 0, %s111
      %s115 = sphi 0, %s114
      %s131 = sphi 0, %s115
    $region4: #{tpu_custom_call.1} parent=1 // loop_header_branch
      %20 = sbr.rel (%p18) target = $region8
    $region5: #{tpu_custom_call.1} parent=1 // loop_body
      %s22 = ssub.s32 %s17, 1
      %s23 = ssub.s32 %s17, 2
      %s30 = sadd.s32 1, %s25
      %p31 = scmp.ge.s32.totalorder %s30, 1
      %s32 = scalar_select %p31, 0, %s30
      %s33 = sadd.s32 1, %s24
      %s34 = scalar_select %p31, %s33, %s24
      %p35 = scmp.ge.s32.totalorder %s34, 2
      %s36 = scalar_select %p35, 0, %s34
      %s37 = ssub.s32 %s24, %s36
      %s38 = ssub.s32 %s25, %s32
      %s39 = sor.u32 %s37, %s38
      %p40 = scmp.eq.s32.totalorder %s39, 0
      %s42 = sadd.s32 %s41, 1
      %s43 = scalar_select %p40, %s41, %s42
      %p46 = pneg %p40
      %p47 = scmp.eq.s32.totalorder %s17, 1
      %p48 = por %p46, %p47
      %p49 = scmp.ne.s32.totalorder %s41, %s44
      %p50 = scmp.eq.s32.totalorder %s17, 0
      %p51 = por %p49, %p50
      %p52 = scmp.ne.s32.totalorder %s41, %s44
      %p53 = scmp.eq.s32.totalorder %s22, 1
      %p54 = por %p52, %p53
      %p55 = scmp.ne.s32.totalorder %s44, %s45
      %p56 = scmp.eq.s32.totalorder %s22, 0
      %p57 = por %p55, %p56
      %p58 = scmp.ne.s32.totalorder %s44, %s45
      %p59 = scmp.eq.s32.totalorder %s23, 1
      %p60 = por %p58, %p59
      %p62 = scmp.ne.s32.totalorder %s45, %s61
      %p63 = scmp.eq.s32.totalorder %s23, 0
      %p64 = por %p62, %p63
      %s66 = sadd.s32 %s65, 1
      %p69 = scmp.eq.s32.totalorder %s17, 1
      %p70 = scmp.ne.s32.totalorder %s65, %s67
      %p71 = scmp.eq.s32.totalorder %s17, 0
      %p72 = por %p70, %p71
      %p73 = scmp.ne.s32.totalorder %s65, %s67
      %p74 = scmp.eq.s32.totalorder %s22, 1
      %p75 = por %p73, %p74
      %p76 = scmp.ne.s32.totalorder %s67, %s68
      %p77 = scmp.eq.s32.totalorder %s22, 0
      %p78 = por %p76, %p77
      %p79 = scmp.ne.s32.totalorder %s67, %s68
      %p80 = scmp.eq.s32.totalorder %s23, 1
      %p81 = por %p79, %p80
      %p83 = scmp.ne.s32.totalorder %s68, %s82
      %p84 = scmp.eq.s32.totalorder %s23, 0
      %p85 = por %p83, %p84
      %s87 = sadd.s32 %s86, 1
      %p90 = scmp.eq.s32.totalorder %s17, 1
      %p91 = scmp.ne.s32.totalorder %s86, %s88
      %p92 = scmp.eq.s32.totalorder %s17, 0
      %p93 = por %p91, %p92
      %p94 = scmp.ne.s32.totalorder %s86, %s88
      %p95 = scmp.eq.s32.totalorder %s22, 1
      %p96 = por %p94, %p95
      %p97 = scmp.ne.s32.totalorder %s88, %s89
      %p98 = scmp.eq.s32.totalorder %s22, 0
      %p99 = por %p97, %p98
      %p100 = scmp.ne.s32.totalorder %s88, %s89
      %p101 = scmp.eq.s32.totalorder %s23, 1
      %p102 = por %p100, %p101
      %p104 = scmp.ne.s32.totalorder %s89, %s103
      %p105 = scmp.eq.s32.totalorder %s23, 0
      %p106 = por %p104, %p105
      %s107 = ssub.s32 %s24, %s36
      %s108 = ssub.s32 %s25, %s32
      %s109 = sor.u32 %s107, %s108
      %p110 = scmp.eq.s32.totalorder %s109, 0
      %s112 = sadd.s32 %s111, 1
      %s113 = scalar_select %p110, %s111, %s112
      %p116 = pneg %p110
      %p117 = scmp.eq.s32.totalorder %s17, 1
      %p118 = por %p116, %p117
      %p119 = scmp.ne.s32.totalorder %s111, %s114
      %p120 = scmp.eq.s32.totalorder %s17, 0
      %p121 = por %p119, %p120
      %p122 = scmp.ne.s32.totalorder %s111, %s114
      %p123 = scmp.eq.s32.totalorder %s22, 1
      %p124 = por %p122, %p123
      %p125 = scmp.ne.s32.totalorder %s114, %s115
      %p126 = scmp.eq.s32.totalorder %s22, 0
      %p127 = por %p125, %p126
      %p128 = scmp.ne.s32.totalorder %s114, %s115
      %p129 = scmp.eq.s32.totalorder %s23, 1
      %p130 = por %p128, %p129
      %p132 = scmp.ne.s32.totalorder %s115, %s131
      %p133 = scmp.eq.s32.totalorder %s23, 0
      %p134 = por %p132, %p133
      %p135 = scmp.le.s32.totalorder 1, %s17
      %p136 = scmp.lt.s32.totalorder %s17, 3
      %p137 = pnand %p135, %p136
      %p138 = pneg %p137
      // Predicated region
      $region9: #{tpu_custom_call.1} parent=5 // pred_check
        _
      $region10: #{tpu_custom_call.1} parent=5 // pred_check_branch
        %140 = sbr.rel (%p137) target = $region12
      $region11: #{tpu_custom_call.1} parent=5 // pred_region
        %s141 = ssub.s32 %s17, 1
        // Predicated region
        $region13: #{tpu_custom_call.1} parent=11 // pred_check
          %p142 = pneg %p78
        $region14: #{tpu_custom_call.1} parent=11 // pred_check_branch
          %144 = sbr.rel (%p142) target = $region16
        $region15: #{tpu_custom_call.1} parent=11 // pred_region
          %146 = vsyncadd [#allocation5], 0
          %s148 = sshll.u32 %s1, 4
          %s149 = int_to_ptr.hbm [resolvable:$true] %s148
          %151 = dma.hbm_to_smem %s149, 64, [#allocation7], [#allocation5]
        $region16: #{tpu_custom_call.1} parent=11 // pred_fallthru
          _
        // Predicated region
        $region17: #{tpu_custom_call.1} parent=11 // pred_check
          %p152 = pneg %p99
        $region18: #{tpu_custom_call.1} parent=11 // pred_check_branch
          %154 = sbr.rel (%p152) target = $region20
        $region19: #{tpu_custom_call.1} parent=11 // pred_region
          %156 = vsyncadd [#allocation6], 0
          %s158 = sshll.u32 %s2, 4
          %s159 = int_to_ptr.vmem [resolvable:$true] %s158
          %161 = dma.vmem_to_smem %s159, 16, [#allocation8], [#allocation6]
        $region20: #{tpu_custom_call.1} parent=11 // pred_fallthru
          _
      $region12: #{tpu_custom_call.1} parent=5 // pred_fallthru
        _
      %p162 = scmp.lt.s32.totalorder %s17, 2
      // Predicated region
      $region21: #{tpu_custom_call.1} parent=5 // pred_check
        %p163 = pneg %p162
      $region22: #{tpu_custom_call.1} parent=5 // pred_check_branch
        %165 = sbr.rel (%p163) target = $region24
      $region23: #{tpu_custom_call.1} parent=5 // pred_region
        // Predicated region
        $region25: #{tpu_custom_call.1} parent=23 // pred_check
          %p166 = pneg %p51
        $region26: #{tpu_custom_call.1} parent=23 // pred_check_branch
          %168 = sbr.rel (%p166) target = $region28
        $region27: #{tpu_custom_call.1} parent=23 // pred_region
          %s169 = sand.u32 %s41, 1
          %s170 = scalar_lea.sflag [#allocation3], %s169
          %s171 = sand.u32 %s41, 1
          %s172 = smul.addr %s171, 8
          %s173 = scalar_lea.vmem [#allocation2], %s172
          %s174 = smul.u32 2, %s25
          %176 = vsyncadd %s170, 0
          %s177 = smul.addr %s24, 2
          %s178 = sadd.s32 %s174, %s177
          %s179 = smul.addr %s178, 4
          %s180 = scalar_lea.hbm %s0, %s179
          %s182 = sshll.u32 %s180, 4
          %s183 = int_to_ptr.hbm [resolvable:$true] %s182
          %s184 = sshll.u32 %s173, 4
          %s185 = int_to_ptr.vmem [resolvable:$true] %s184
          %187 = dma.hbm_to_vmem [thread:$0]  %s183, 128, %s185, %s170
        $region28: #{tpu_custom_call.1} parent=23 // pred_fallthru
          _
      $region24: #{tpu_custom_call.1} parent=5 // pred_fallthru
        _
      %p188 = scmp.le.s32.totalorder 1, %s17
      %p189 = scmp.lt.s32.totalorder %s17, 3
      %p190 = pnand %p188, %p189
      %p191 = pneg %p190
      // Predicated region
      $region29: #{tpu_custom_call.1} parent=5 // pred_check
        _
      $region30: #{tpu_custom_call.1} parent=5 // pred_check_branch
        %193 = sbr.rel (%p190) target = $region32
      $region31: #{tpu_custom_call.1} parent=5 // pred_region
        %s194 = ssub.s32 %s17, 1
        %s195 = sand.u32 %s44, 1
        %s196 = scalar_lea.sflag [#allocation3], %s195
        %s197 = sand.u32 %s44, 1
        %s198 = smul.addr %s197, 8
        %s199 = scalar_lea.vmem [#allocation2], %s198
        // Predicated region
        $region33: #{tpu_custom_call.1} parent=31 // pred_check
          %p200 = pneg %p57
        $region34: #{tpu_custom_call.1} parent=31 // pred_check_branch
          %202 = sbr.rel (%p200) target = $region36
        $region35: #{tpu_custom_call.1} parent=31 // pred_region
          %204 = dma.done %s196, 128
        $region36: #{tpu_custom_call.1} parent=31 // pred_fallthru
          _
        // Predicated region
        $region37: #{tpu_custom_call.1} parent=31 // pred_check
          %p205 = pneg %p78
        $region38: #{tpu_custom_call.1} parent=31 // pred_check_branch
          %207 = sbr.rel (%p205) target = $region40
        $region39: #{tpu_custom_call.1} parent=31 // pred_region
          %209 = dma.done [#allocation5], 64
        $region40: #{tpu_custom_call.1} parent=31 // pred_fallthru
          _
        // Predicated region
        $region41: #{tpu_custom_call.1} parent=31 // pred_check
          %p210 = pneg %p99
        $region42: #{tpu_custom_call.1} parent=31 // pred_check_branch
          %212 = sbr.rel (%p210) target = $region44
        $region43: #{tpu_custom_call.1} parent=31 // pred_region
          %214 = dma.done [#allocation6], 16
        $region44: #{tpu_custom_call.1} parent=31 // pred_fallthru
          _
        %215 = sfence
        %s216 = sand.u32 %s44, 1
        %s217 = scalar_lea.sflag [#allocation3], %s216
        %s218 = sand.u32 %s44, 1
        %s219 = smul.addr %s218, 8
        %s220 = scalar_lea.vmem [#allocation2], %s219
        %p221 = pneg %p57
        %p222 = pneg %p54
        %p223 = pneg %p78
        %p224 = pneg %p75
        %p225 = pneg %p99
        %p226 = pneg %p96
        %p227 = pneg %p127
        %p228 = pneg %p124
        %s229 = sand.u32 %s114, 1
        %s230 = scalar_lea.sflag [#allocation4], %s229
        %s231 = sand.u32 %s114, 1
        %s232 = smul.addr %s231, 8
        %s233 = scalar_lea.vmem [#allocation9], %s232
        %s234 = smul.u32 2, %s27
        %s235 = smul.u32 2, %s27
        %v236 = vld [vmem:[%s199] sm:$0xff]
        %s237 = sld [smem:[#allocation7]]
        %v238 = vstv %s237
        %v239 = vmul.f32 %v236, %v238
        %s240 = sld [smem:[#allocation8]]
        %v241 = vstv %s240
        %v242 = vadd.f32 %v239, %v241
        %s243 = sld [smem:[#allocation7 + $0x1]]
        %v244 = vstv %s243
        %v245 = vmul.f32 %v236, %v244
        %v247 = vrot.slane %v245, 5
        %v248 = vrot.slane %v247, 4
        %v250 = vadd.f32 %v242, %v248
        %s251 = sld [smem:[#allocation7 + $0x2]]
        %v252 = vstv %s251
        %v253 = vmul.f32 %v236, %v252
        %v255 = vrot.slane %v253, 6
        %v256 = vrot.slane %v255, 4
        %v258 = vadd.f32 %v250, %v256
        %s259 = sld [smem:[#allocation7 + $0x3]]
        %v260 = vstv %s259
        %v261 = vmul.f32 %v236, %v260
        %v263 = vrot.slane %v261, 7
        %v264 = vrot.slane %v263, 4
        %v266 = vadd.f32 %v258, %v264
        %s267 = sld [smem:[#allocation7 + $0x80]]
        %v268 = vstv %s267
        %v269 = vmul.f32 %v236, %v268
        %s270 = sld [smem:[#allocation8 + $0x1]]
        %v271 = vstv %s270
        %v272 = vadd.f32 %v269, %v271
        %s273 = sld [smem:[#allocation7 + $0x81]]
        %v274 = vstv %s273
        %v275 = vmul.f32 %v236, %v274
        %v277 = vrot.slane %v275, 5
        %v278 = vrot.slane %v277, 4
        %v280 = vadd.f32 %v272, %v278
        %s281 = sld [smem:[#allocation7 + $0x82]]
        %v282 = vstv %s281
        %v283 = vmul.f32 %v236, %v282
        %v285 = vrot.slane %v283, 6
        %v286 = vrot.slane %v285, 4
        %v288 = vadd.f32 %v280, %v286
        %s289 = sld [smem:[#allocation7 + $0x83]]
        %v290 = vstv %s289
        %v291 = vmul.f32 %v236, %v290
        %v293 = vrot.slane %v291, 7
        %v294 = vrot.slane %v293, 4
        %v296 = vadd.f32 %v288, %v294
        %s297 = sld [smem:[#allocation7 + $0x100]]
        %v298 = vstv %s297
        %v299 = vmul.f32 %v236, %v298
        %s300 = sld [smem:[#allocation8 + $0x2]]
        %v301 = vstv %s300
        %v302 = vadd.f32 %v299, %v301
        %s303 = sld [smem:[#allocation7 + $0x101]]
        %v304 = vstv %s303
        %v305 = vmul.f32 %v236, %v304
        %v307 = vrot.slane %v305, 5
        %v308 = vrot.slane %v307, 4
        %v310 = vadd.f32 %v302, %v308
        %s311 = sld [smem:[#allocation7 + $0x102]]
        %v312 = vstv %s311
        %v313 = vmul.f32 %v236, %v312
        %v315 = vrot.slane %v313, 6
        %v316 = vrot.slane %v315, 4
        %v318 = vadd.f32 %v310, %v316
        %s319 = sld [smem:[#allocation7 + $0x103]]
        %v320 = vstv %s319
        %v321 = vmul.f32 %v236, %v320
        %v323 = vrot.slane %v321, 7
        %v324 = vrot.slane %v323, 4
        %v326 = vadd.f32 %v318, %v324
        %s327 = sld [smem:[#allocation7 + $0x180]]
        %v328 = vstv %s327
        %v329 = vmul.f32 %v236, %v328
        %s330 = sld [smem:[#allocation8 + $0x3]]
        %v331 = vstv %s330
        %v332 = vadd.f32 %v329, %v331
        %s333 = sld [smem:[#allocation7 + $0x181]]
        %v334 = vstv %s333
        %v335 = vmul.f32 %v236, %v334
        %v337 = vrot.slane %v335, 5
        %v338 = vrot.slane %v337, 4
        %v340 = vadd.f32 %v332, %v338
        %s341 = sld [smem:[#allocation7 + $0x182]]
        %v342 = vstv %s341
        %v343 = vmul.f32 %v236, %v342
        %v345 = vrot.slane %v343, 6
        %v346 = vrot.slane %v345, 4
        %v348 = vadd.f32 %v340, %v346
        %s349 = sld [smem:[#allocation7 + $0x183]]
        %v350 = vstv %s349
        %v351 = vmul.f32 %v236, %v350
        %v353 = vrot.slane %v351, 7
        %v354 = vrot.slane %v353, 4
        %v356 = vadd.f32 %v348, %v354
        %v358 = vperm.slane %v266, 0
        %v359 = vperm.slane %v266, 4
        %v363 = vperm.slane %v296, 0
        %v364 = vperm.slane %v296, 4
        %v368 = vperm.slane %v326, 0
        %v369 = vperm.slane %v326, 4
        %v373 = vperm.slane %v356, 0
        %v374 = vperm.slane %v356, 4
        %vm377 = vcmask 1040384
        %v378 = vsel %vm377, %v358, %v363
        %v379 = vsel %vm377, %v359, %v364
        %vm380 = vcmask 1041408
        %v381 = vsel %vm380, %v378, %v368
        %v382 = vsel %vm380, %v379, %v369
        %vm383 = vcmask 1042432
        %v384 = vsel %vm383, %v381, %v373
        %v385 = vsel %vm383, %v382, %v374
        %v386 = vxor.u32 %v384, 2147483648
        %v387 = vxor.u32 %v385, 2147483648
        %v388 = vmul.f32 %v386, 1.442695
        %v389 = vpow.pop %v388
        %v390 = vmul.f32 %v387, 1.442695
        %v391 = vpow.pop %v390
        %v392 = vadd.f32 %v389, 1.0
        %v393 = vadd.f32 %v391, 1.0
        %v394 = vrcp.pop %v392
        %v395 = vmul.f32 %v392, %v394
        %v396 = vsub.f32 1.0, %v395
        %v397 = vmul.f32 %v394, %v396
        %v398 = vadd.f32 %v394, %v397
        %vm399 = vweird.f32 %v392
        %vm400 = vweird.f32 %v394
        %vm401 = vmor %vm399, %vm400
        %v402 = vsel %vm401, %v394, %v398
        %v403 = vand.u32 2147483647, %v392
        %vm404 = vcmp.eq.f32.partialorder %v403, 8.507059e+37
        %v405 = vand.u32 %v392, 2147483648
        %v406 = vor.u32 1.1754944e-38, %v405
        %v407 = vsel %vm404, %v406, %v402
        %v408 = vmul.f32 1.0, %v407
        %v409 = vrcp.pop %v393
        %v410 = vmul.f32 %v393, %v409
        %v411 = vsub.f32 1.0, %v410
        %v412 = vmul.f32 %v409, %v411
        %v413 = vadd.f32 %v409, %v412
        %vm414 = vweird.f32 %v393
        %vm415 = vweird.f32 %v409
        %vm416 = vmor %vm414, %vm415
        %v417 = vsel %vm416, %v409, %v413
        %v418 = vand.u32 2147483647, %v393
        %vm419 = vcmp.eq.f32.partialorder %v418, 8.507059e+37
        %v420 = vand.u32 %v393, 2147483648
        %v421 = vor.u32 1.1754944e-38, %v420
        %v422 = vsel %vm419, %v421, %v417
        %v423 = vmul.f32 1.0, %v422
        %v426 = vrot.slane %v423, 4
        %vm427 = vcmask 1043456
        %v428 = vsel %vm427, %v408, %v426
        %v430 = vmul.f32 %v236, %v428
        %431 = vst [vmem:[%s233] sm:$0xff] %v430
        %s432 = sand.u32 %s114, 1
        %s433 = scalar_lea.sflag [#allocation4], %s432
        %s434 = sand.u32 %s114, 1
        %s435 = smul.addr %s434, 8
        %s436 = scalar_lea.vmem [#allocation9], %s435
        // Predicated region
        $region45: #{tpu_custom_call.1} parent=31 // pred_check
          %p437 = pneg %p124
        $region46: #{tpu_custom_call.1} parent=31 // pred_check_branch
          %439 = sbr.rel (%p437) target = $region48
        $region47: #{tpu_custom_call.1} parent=31 // pred_region
          %s440 = smul.u32 2, %s27
          %442 = vsyncadd %s433, 0
          %s443 = smul.addr %s26, 2
          %s444 = sadd.s32 %s440, %s443
          %s445 = smul.addr %s444, 4
          %s446 = scalar_lea.hbm %s3, %s445
          %s448 = sshll.u32 %s436, 4
          %s449 = int_to_ptr.vmem [resolvable:$true] %s448
          %s450 = sshll.u32 %s446, 4
          %s451 = int_to_ptr.hbm [resolvable:$true] %s450
          %453 = dma.vmem_to_hbm [thread:$0]  %s449, 128, %s451, %s433
        $region48: #{tpu_custom_call.1} parent=31 // pred_fallthru
          _
      $region32: #{tpu_custom_call.1} parent=5 // pred_fallthru
        _
      %p454 = scmp.le.s32.totalorder 2, %s17
      // Predicated region
      $region49: #{tpu_custom_call.1} parent=5 // pred_check
        %p455 = pneg %p454
      $region50: #{tpu_custom_call.1} parent=5 // pred_check_branch
        %457 = sbr.rel (%p455) target = $region52
      $region51: #{tpu_custom_call.1} parent=5 // pred_region
        %s458 = ssub.s32 %s17, 2
        // Predicated region
        $region53: #{tpu_custom_call.1} parent=51 // pred_check
          %p459 = pneg %p130
        $region54: #{tpu_custom_call.1} parent=51 // pred_check_branch
          %461 = sbr.rel (%p459) target = $region56
        $region55: #{tpu_custom_call.1} parent=51 // pred_region
          %s462 = sand.u32 %s115, 1
          %s463 = scalar_lea.sflag [#allocation4], %s462
          %s464 = sand.u32 %s115, 1
          %s465 = smul.addr %s464, 8
          %s466 = scalar_lea.vmem [#allocation9], %s465
          %468 = dma.done %s463, 128
        $region56: #{tpu_custom_call.1} parent=51 // pred_fallthru
          _
      $region52: #{tpu_custom_call.1} parent=5 // pred_fallthru
        _
    $region6: #{tpu_custom_call.1} parent=1 // loop_footer
      %s21 = sadd.s32 1, %s17
    $region7: #{tpu_custom_call.1} parent=1 // loop_footer_branch
      %16 = sbr.rel target = $region3
    $region8: #{tpu_custom_call.1} parent=1 // loop_exit
      _
    %469 = vsyncpa [#allocation3], 1
    %s470 = scalar_lea.sflag [#allocation3], 1
    %471 = vsyncpa %s470, 1
    %472 = vsyncpa [#allocation4], 1
    %s473 = scalar_lea.sflag [#allocation4], 1
    %474 = vsyncpa %s473, 1
    %475 = vsyncpa [#allocation5], 1
    %s476 = scalar_lea.sflag [#allocation5], 1
    %477 = vsyncpa %s476, 1
    %478 = vsyncpa [#allocation6], 1
    %s479 = scalar_lea.sflag [#allocation6], 1
    %480 = vsyncpa %s479, 1

</llo_original>
